<compile_context>
chip_gen: v5e
topology: v5e:2x2
jax: 0.10.0
libtpu: 0.0.40
codegen_flags: <defaults>
</compile_context>

<pallas_src>
import functools

import jax
import jax.numpy as jnp
from jax.experimental import pallas as pl
from jax.experimental.pallas import tpu as pltpu


def _round_up(x, m):
    return ((x + m - 1) // m) * m


def transition_vae_kernel(
    # batch-tiled activations
    x_enc_ref,   # (Bm, 2S+A) f32 = concat([s, a, s_next])
    eps_ref,     # (Bm, L)    f32
    # resident packed weights / biases
    w_big_ref,   # (2S+A, 2L+H) bf16 = [We@Wmu | We@Wlogvar | Wd1 zero-padded over s_next rows]
    b_big_ref,   # (1, 2L+H)    f32  = [be@Wmu+bmu | be@Wlogvar+blogvar | bd1]
    wdz_ref,     # (L, H)  bf16
    wd2_ref,     # (H, O)  bf16
    bd2_ref,     # (1, O)  f32
    # output slab
    out_ref,     # (Bm, 2L+O) f32 = [mu | logvar | recon]
    *, latent_dim,
):
    L = latent_dim

    # ---- one fused MXU push: [mu | logvar | hd_partial] = x_enc @ W_big + b_big ----
    x = x_enc_ref[...].astype(jnp.bfloat16)
    big = jnp.dot(x, w_big_ref[...], preferred_element_type=jnp.float32) + b_big_ref[...]

    mu = big[:, :L]
    logvar = big[:, L:2 * L]
    hd_part = big[:, 2 * L:]          # = [s,a] @ Wd1 + bd1   (s_next rows zeroed in W_big)

    # ---- reparameterize (VPU adds/muls + EUP exp, all f32) ----
    z = mu + eps_ref[...] * jnp.exp(0.5 * logvar)

    # ---- decoder: ReLU(hd_part + z @ Wdz) @ Wd2 + bd2 ----
    hd = hd_part + jnp.dot(z.astype(jnp.bfloat16), wdz_ref[...],
                           preferred_element_type=jnp.float32)
    hd = jnp.maximum(hd, 0.0)
    recon = jnp.dot(hd.astype(jnp.bfloat16), wd2_ref[...],
                    preferred_element_type=jnp.float32) + bd2_ref[...]

    # ---- single lane-dense slab store: [mu | logvar | recon] ----
    out_ref[...] = jnp.concatenate([big[:, :2 * L], recon], axis=-1)


@functools.partial(jax.jit, static_argnames=("block_b",))
def transition_vae_forward(s, a, s_next, eps, params, *, block_b=None):
    """Full VAE forward in one gridded Pallas kernel (weights folded+resident, batch tiled)."""
    f32, bf16 = jnp.float32, jnp.bfloat16

    B, state_dim = s.shape
    action_dim = a.shape[1]
    hidden_dim = params["we"].shape[1]
    latent_dim = params["w_mu"].shape[1]
    out_dim = params["wd2"].shape[1]
    enc_in = 2 * state_dim + action_dim
    dec_in = state_dim + action_dim
    slab_dim = 2 * latent_dim + out_dim

    # ---- offline weight fold / pack (exact affine composition; encoder act is Identity) ----
    we, be = params["we"].astype(f32), params["be"].astype(f32)
    w_head = jnp.concatenate([we @ params["w_mu"], we @ params["w_logvar"]], axis=1)
    b_head = jnp.concatenate(
        [be @ params["w_mu"] + params["b_mu"],
         be @ params["w_logvar"] + params["b_logvar"]], axis=1)
    wd1_pad = jnp.zeros((enc_in, hidden_dim), f32).at[:dec_in, :].set(params["wd1"])
    w_big = jnp.concatenate([w_head, wd1_pad], axis=1).astype(bf16)   # (enc_in, 2L+H)
    b_big = jnp.concatenate([b_head, params["bd1"]], axis=1).astype(f32)
    wdz = params["wdz"].astype(bf16)
    wd2 = params["wd2"].astype(bf16)
    bd2 = params["bd2"].astype(f32)

    # Static concat in XLA (one fused op); x_dec stream removed (redundant with x_enc).
    x_enc = jnp.concatenate([s, a, s_next], axis=1).astype(f32)
    eps = eps.astype(f32)

    # ---- batch tile selection: big blocks, minimal padding, >=2 steps for v7x megacore ----
    CAP = 4096                                  # double-buffered f32 activations ~ few MiB
    if block_b is None:
        min_blocks = 2 if B >= 16 else 1        # fill both TensorCores on v7x
        n_blocks = max(pl.cdiv(B, CAP), min_blocks)
        block_b = _round_up(pl.cdiv(B, n_blocks), 8)
    padded_b = _round_up(B, block_b)
    if padded_b != B:
        pad = ((0, padded_b - B), (0, 0))
        x_enc = jnp.pad(x_enc, pad)
        eps = jnp.pad(eps, pad)
    grid = (padded_b // block_b,)

    def act_spec(d):
        return pl.BlockSpec((block_b, d), lambda i: (i, 0))

    def res_spec(arr):   # resident: constant block index -> DMA'd once, not re-fetched
        return pl.BlockSpec(arr.shape, lambda i: (0, 0))

    weights = [w_big, b_big, wdz, wd2, bd2]

    flops = 2 * padded_b * (enc_in * (2 * latent_dim + hidden_dim)
                            + latent_dim * hidden_dim
                            + hidden_dim * out_dim)
    bytes_accessed = (4 * (x_enc.size + eps.size + padded_b * slab_dim)
                      + 2 * (w_big.size + wdz.size + wd2.size)
                      + 4 * (b_big.size + bd2.size))
    cost = pl.CostEstimate(flops=int(flops),
                           transcendentals=int(padded_b * latent_dim),
                           bytes_accessed=int(bytes_accessed))

    slab = pl.pallas_call(
        functools.partial(transition_vae_kernel, latent_dim=latent_dim),
        out_shape=jax.ShapeDtypeStruct((padded_b, slab_dim), jnp.float32),
        grid=grid,
        in_specs=[act_spec(enc_in), act_spec(latent_dim)] + [res_spec(w) for w in weights],
        out_specs=act_spec(slab_dim),
        compiler_params=pltpu.CompilerParams(
            dimension_semantics=("parallel",),
            vmem_limit_bytes=32 * 1024 * 1024,   # v7x-safe (64 MiB physical)
        ),
        cost_estimate=cost,
    )(x_enc, eps, *weights)

    mu = slab[:B, :latent_dim]
    logvar = slab[:B, latent_dim:2 * latent_dim]
    recon = slab[:B, 2 * latent_dim:]
    return recon, mu, logvar


def reference_forward(s, a, s_next, eps, p):
    """Pure-JAX f32 reference mirroring the PyTorch module semantics (unfused params)."""
    h = jnp.concatenate([s, a, s_next], axis=1) @ p["we"] + p["be"]     # Identity activation
    mu = h @ p["w_mu"] + p["b_mu"]
    logvar = h @ p["w_logvar"] + p["b_logvar"]
    z = mu + eps * jnp.exp(0.5 * logvar)
    hd = jnp.maximum(
        jnp.concatenate([s, a], axis=1) @ p["wd1"] + z @ p["wdz"] + p["bd1"], 0.0)
    recon = hd @ p["wd2"] + p["bd2"]
    return recon, mu, logvar


def init_params(key, state_dim, action_dim, out_dim, hidden_dim, latent_dim):
    ks = jax.random.split(key, 10)
    scale = 0.1

    def w(k, shape):
        return scale * jax.random.normal(k, shape, dtype=jnp.float32)

    enc_in = 2 * state_dim + action_dim
    dec_in = state_dim + action_dim
    return dict(
        we=w(ks[0], (enc_in, hidden_dim)), be=w(ks[1], (1, hidden_dim)),
        w_mu=w(ks[2], (hidden_dim, latent_dim)), b_mu=w(ks[3], (1, latent_dim)),
        w_logvar=w(ks[4], (hidden_dim, latent_dim)), b_logvar=w(ks[5], (1, latent_dim)),
        wd1=w(ks[6], (dec_in, hidden_dim)), wdz=w(ks[7], (latent_dim, hidden_dim)),
        bd1=jnp.zeros((1, hidden_dim), jnp.float32),
        wd2=w(ks[8], (hidden_dim, out_dim)), bd2=jnp.zeros((1, out_dim), jnp.float32),
    )


def _check(out, ref, tag):
    # bf16 MXU operands (per perf review) -> relaxed tolerance vs the f32 reference.
    for o, r, n in zip(out, ref, ("recon", "mu", "logvar")):
        assert jnp.allclose(o, r, atol=2.5e-2, rtol=2.5e-2), f"{tag}:{n} mismatch"


if __name__ == "__main__":
    B, STATE_DIM, ACTION_DIM, OUT_DIM, HIDDEN_DIM, LATENT_DIM = 8, 16, 8, 16, 32, 16

    root = jax.random.PRNGKey(0)
    k_s, k_a, k_sn, k_eps, k_p = jax.random.split(root, 5)

    s = jax.random.normal(k_s, (B, STATE_DIM), dtype=jnp.float32)
    a = jax.random.normal(k_a, (B, ACTION_DIM), dtype=jnp.float32)
    s_next = jax.random.normal(k_sn, (B, STATE_DIM), dtype=jnp.float32)
    # eps for reparameterize (torch.randn_like equivalent), generated in JAX glue
    eps = jax.random.normal(k_eps, (B, LATENT_DIM), dtype=jnp.float32)

    params = init_params(k_p, STATE_DIM, ACTION_DIM, OUT_DIM, HIDDEN_DIM, LATENT_DIM)

    recon, mu, logvar = transition_vae_forward(s, a, s_next, eps, params)
    jax.block_until_ready((recon, mu, logvar))
    assert recon.shape == (B, OUT_DIM) and mu.shape == (B, LATENT_DIM) and logvar.shape == (B, LATENT_DIM)
    _check((recon, mu, logvar), reference_forward(s, a, s_next, eps, params), "B8")

    # Ragged batch with explicit small block: exercises >1 grid step + padding path.
    B2 = 20
    k2 = jax.random.split(root, 9)
    s2 = jax.random.normal(k2[5], (B2, STATE_DIM), dtype=jnp.float32)
    a2 = jax.random.normal(k2[6], (B2, ACTION_DIM), dtype=jnp.float32)
    sn2 = jax.random.normal(k2[7], (B2, STATE_DIM), dtype=jnp.float32)
    eps2 = jax.random.normal(k2[8], (B2, LATENT_DIM), dtype=jnp.float32)
    out2 = transition_vae_forward(s2, a2, sn2, eps2, params, block_b=8)
    jax.block_until_ready(out2)
    _check(out2, reference_forward(s2, a2, sn2, eps2, params), "B20")

    # Larger batch with default block selection: exercises the >=2-block (megacore) path.
    B3 = 300
    k3 = jax.random.split(jax.random.PRNGKey(1), 4)
    s3 = jax.random.normal(k3[0], (B3, STATE_DIM), dtype=jnp.float32)
    a3 = jax.random.normal(k3[1], (B3, ACTION_DIM), dtype=jnp.float32)
    sn3 = jax.random.normal(k3[2], (B3, STATE_DIM), dtype=jnp.float32)
    eps3 = jax.random.normal(k3[3], (B3, LATENT_DIM), dtype=jnp.float32)
    out3 = transition_vae_forward(s3, a3, sn3, eps3, params)
    jax.block_until_ready(out3)
    _check(out3, reference_forward(s3, a3, sn3, eps3, params), "B300")

    print("KERNEL_OK")
</pallas_src>

<mosaic_0001>
module attributes {stable_mosaic.version = 11 : i64} {
  func.func @transition_vae_kernel(%arg0: i32, %arg1: memref<8x40xf32, #tpu.memory_space<vmem>>, %arg2: memref<8x16xf32, #tpu.memory_space<vmem>>, %arg3: memref<40x64xbf16, #tpu.memory_space<vmem>>, %arg4: memref<1x64xf32, #tpu.memory_space<vmem>>, %arg5: memref<16x32xbf16, #tpu.memory_space<vmem>>, %arg6: memref<32x16xbf16, #tpu.memory_space<vmem>>, %arg7: memref<1x16xf32, #tpu.memory_space<vmem>>, %arg8: memref<8x48xf32, #tpu.memory_space<vmem>>) attributes {dimension_semantics = [#tpu.dimension_semantics<parallel>], iteration_bounds = array<i64: 1>, scalar_prefetch = 0 : i64, scratch_operands = 0 : i64, tpu.core_type = #tpu.core_type<tc>, window_params = [{transform_indices = @transform_0, window_bounds = array<i64: 8, 40>}, {transform_indices = @transform_1, window_bounds = array<i64: 8, 16>}, {pipeline_mode = #tpu.pipeline_mode<synchronous>, transform_indices = @transform_2, window_bounds = array<i64: 40, 64>}, {pipeline_mode = #tpu.pipeline_mode<synchronous>, transform_indices = @transform_3, window_bounds = array<i64: 1, 64>}, {pipeline_mode = #tpu.pipeline_mode<synchronous>, transform_indices = @transform_4, window_bounds = array<i64: 16, 32>}, {pipeline_mode = #tpu.pipeline_mode<synchronous>, transform_indices = @transform_5, window_bounds = array<i64: 32, 16>}, {pipeline_mode = #tpu.pipeline_mode<synchronous>, transform_indices = @transform_6, window_bounds = array<i64: 1, 16>}, {transform_indices = @transform_7, window_bounds = array<i64: 8, 48>}]} {
    %c0 = arith.constant 0 : index
    %c0_0 = arith.constant 0 : index
    %0 = vector.load %arg1[%c0, %c0_0] : memref<8x40xf32, #tpu.memory_space<vmem>>, vector<8x40xf32>
    %1 = arith.truncf %0 : vector<8x40xf32> to vector<8x40xbf16>
    %c0_1 = arith.constant 0 : index
    %c0_2 = arith.constant 0 : index
    %2 = vector.load %arg3[%c0_1, %c0_2] : memref<40x64xbf16, #tpu.memory_space<vmem>>, vector<40x64xbf16>
    %cst = arith.constant dense<0.000000e+00> : vector<8x64xf32>
    %3 = tpu.matmul %1, %2, %cst {dimension_numbers = #tpu.dot_dimension_numbers<[1], [0], [0], [1], [0, 0, 1, 1], [], []>} : vector<8x40xbf16>, vector<40x64xbf16>, vector<8x64xf32> -> vector<8x64xf32>
    %c0_3 = arith.constant 0 : index
    %c0_4 = arith.constant 0 : index
    %4 = vector.load %arg4[%c0_3, %c0_4] : memref<1x64xf32, #tpu.memory_space<vmem>>, vector<1x64xf32>
    %5 = vector.broadcast %4 : vector<1x64xf32> to vector<8x64xf32>
    %6 = arith.addf %3, %5 : vector<8x64xf32>
    %7 = vector.extract_strided_slice %6 {offsets = [0, 0], sizes = [8, 16], strides = [1, 1]} : vector<8x64xf32> to vector<8x16xf32>
    %8 = vector.extract_strided_slice %6 {offsets = [0, 16], sizes = [8, 16], strides = [1, 1]} : vector<8x64xf32> to vector<8x16xf32>
    %9 = vector.extract_strided_slice %6 {offsets = [0, 32], sizes = [8, 32], strides = [1, 1]} : vector<8x64xf32> to vector<8x32xf32>
    %c0_5 = arith.constant 0 : index
    %c0_6 = arith.constant 0 : index
    %10 = vector.load %arg2[%c0_5, %c0_6] : memref<8x16xf32, #tpu.memory_space<vmem>>, vector<8x16xf32>
    %cst_7 = arith.constant 5.000000e-01 : f32
    %11 = vector.broadcast %cst_7 : f32 to vector<8x16xf32>
    %12 = arith.mulf %11, %8 : vector<8x16xf32>
    %13 = math.exp %12 : vector<8x16xf32>
    %14 = arith.mulf %10, %13 : vector<8x16xf32>
    %15 = arith.addf %7, %14 : vector<8x16xf32>
    %16 = arith.truncf %15 : vector<8x16xf32> to vector<8x16xbf16>
    %c0_8 = arith.constant 0 : index
    %c0_9 = arith.constant 0 : index
    %17 = vector.load %arg5[%c0_8, %c0_9] : memref<16x32xbf16, #tpu.memory_space<vmem>>, vector<16x32xbf16>
    %cst_10 = arith.constant dense<0.000000e+00> : vector<8x32xf32>
    %18 = tpu.matmul %16, %17, %cst_10 {dimension_numbers = #tpu.dot_dimension_numbers<[1], [0], [0], [1], [0, 0, 1, 1], [], []>} : vector<8x16xbf16>, vector<16x32xbf16>, vector<8x32xf32> -> vector<8x32xf32>
    %19 = arith.addf %9, %18 : vector<8x32xf32>
    %cst_11 = arith.constant 0.000000e+00 : f32
    %20 = vector.broadcast %cst_11 : f32 to vector<8x32xf32>
    %21 = arith.maximumf %19, %20 : vector<8x32xf32>
    %22 = arith.truncf %21 : vector<8x32xf32> to vector<8x32xbf16>
    %c0_12 = arith.constant 0 : index
    %c0_13 = arith.constant 0 : index
    %23 = vector.load %arg6[%c0_12, %c0_13] : memref<32x16xbf16, #tpu.memory_space<vmem>>, vector<32x16xbf16>
    %cst_14 = arith.constant dense<0.000000e+00> : vector<8x16xf32>
    %24 = tpu.matmul %22, %23, %cst_14 {dimension_numbers = #tpu.dot_dimension_numbers<[1], [0], [0], [1], [0, 0, 1, 1], [], []>} : vector<8x32xbf16>, vector<32x16xbf16>, vector<8x16xf32> -> vector<8x16xf32>
    %c0_15 = arith.constant 0 : index
    %c0_16 = arith.constant 0 : index
    %25 = vector.load %arg7[%c0_15, %c0_16] : memref<1x16xf32, #tpu.memory_space<vmem>>, vector<1x16xf32>
    %26 = vector.broadcast %25 : vector<1x16xf32> to vector<8x16xf32>
    %27 = arith.addf %24, %26 : vector<8x16xf32>
    %28 = vector.extract_strided_slice %6 {offsets = [0, 0], sizes = [8, 32], strides = [1, 1]} : vector<8x64xf32> to vector<8x32xf32>
    %29 = tpu.concatenate %28, %27 in 1 : vector<8x32xf32>, vector<8x16xf32> -> vector<8x48xf32>
    %c0_17 = arith.constant 0 : index
    %c0_18 = arith.constant 0 : index
    %30 = vector.load %arg8[%c0_17, %c0_18] : memref<8x48xf32, #tpu.memory_space<vmem>>, vector<8x48xf32>
    tpu.vector_store %arg8[%c0_17, %c0_18], %29 {strides = array<i32>} : memref<8x48xf32, #tpu.memory_space<vmem>>, vector<8x48xf32>,
    return
  }
  func.func @transform_0(%arg0: i32) -> (i32, i32) {
    %c0_i32 = arith.constant 0 : i32
    %c0_i32_0 = arith.constant 0 : i32
    return %arg0, %c0_i32 : i32, i32
  }
  func.func @transform_1(%arg0: i32) -> (i32, i32) {
    %c0_i32 = arith.constant 0 : i32
    %c0_i32_0 = arith.constant 0 : i32
    return %arg0, %c0_i32 : i32, i32
  }
  func.func @transform_2(%arg0: i32) -> (i32, i32) {
    %c0_i32 = arith.constant 0 : i32
    %c0_i32_0 = arith.constant 0 : i32
    %c0_i32_1 = arith.constant 0 : i32
    return %c0_i32, %c0_i32_0 : i32, i32
  }
  func.func @transform_3(%arg0: i32) -> (i32, i32) {
    %c0_i32 = arith.constant 0 : i32
    %c0_i32_0 = arith.constant 0 : i32
    %c0_i32_1 = arith.constant 0 : i32
    return %c0_i32, %c0_i32_0 : i32, i32
  }
  func.func @transform_4(%arg0: i32) -> (i32, i32) {
    %c0_i32 = arith.constant 0 : i32
    %c0_i32_0 = arith.constant 0 : i32
    %c0_i32_1 = arith.constant 0 : i32
    return %c0_i32, %c0_i32_0 : i32, i32
  }
  func.func @transform_5(%arg0: i32) -> (i32, i32) {
    %c0_i32 = arith.constant 0 : i32
    %c0_i32_0 = arith.constant 0 : i32
    %c0_i32_1 = arith.constant 0 : i32
    return %c0_i32, %c0_i32_0 : i32, i32
  }
  func.func @transform_6(%arg0: i32) -> (i32, i32) {
    %c0_i32 = arith.constant 0 : i32
    %c0_i32_0 = arith.constant 0 : i32
    %c0_i32_1 = arith.constant 0 : i32
    return %c0_i32, %c0_i32_0 : i32, i32
  }
  func.func @transform_7(%arg0: i32) -> (i32, i32) {
    %c0_i32 = arith.constant 0 : i32
    %c0_i32_0 = arith.constant 0 : i32
    return %arg0, %c0_i32 : i32, i32
  }
}

</mosaic_0001>

<llo_original>
// kernel: transition_vae_forward.1
$region0: #{transition_vae_forward.1}
  #allocation0 [shape = 'u32[]', space=smem, size = 0x4, offset = 0x4, fixed_abs, tag = 'smem constant byte address 0x4 - core index']
  #allocation1 [shape = 'u32[72,128]{1,0:T(1,128)}', space=vmem, size = 0x9000, scoped, tag = 'internal scratch']
  %s0 = inlined_call_operand.vmem [shape: f32[8,40], index: 0, kind: input, shape index: {}]
  %s1 = inlined_call_operand.vmem [shape: f32[8,16], index: 1, kind: input, shape index: {}]
  %s2 = inlined_call_operand.vmem [shape: bf16[40,64], index: 2, kind: input, shape index: {}]
  %s3 = inlined_call_operand.vmem [shape: f32[1,64], index: 3, kind: input, shape index: {}]
  %s4 = inlined_call_operand.vmem [shape: bf16[16,32], index: 4, kind: input, shape index: {}]
  %s5 = inlined_call_operand.vmem [shape: bf16[32,16], index: 5, kind: input, shape index: {}]
  %s6 = inlined_call_operand.vmem [shape: f32[1,16], index: 6, kind: input, shape index: {}]
  %s7 = inlined_call_operand.vmem [shape: f32[8,48], index: 7, kind: output, shape index: {}]
  %s8 = sld [smem:[#allocation0]]
  $region38: #{transition_vae_forward.1} parent=0
    _
  %s10 = ssub.s32 1, %s8
  %s11 = scalar_select 0, %s10, %s8
  // Predicated region
  $region2: #{transition_vae_forward.1} parent=0 // pred_check
    _
  $region3: #{transition_vae_forward.1} parent=0 // pred_check_branch
    %13 = sbr.rel (0) target = $region5
  $region4: #{transition_vae_forward.1} parent=0 // pred_region
    _
  $region5: #{transition_vae_forward.1} parent=0 // pred_fallthru
    _
  // Predicated region
  $region6: #{transition_vae_forward.1} parent=0 // pred_check
    _
  $region7: #{transition_vae_forward.1} parent=0 // pred_check_branch
    %15 = sbr.rel (0) target = $region9
  $region8: #{transition_vae_forward.1} parent=0 // pred_region
    _
  $region9: #{transition_vae_forward.1} parent=0 // pred_fallthru
    _
  // Predicated region
  $region10: #{transition_vae_forward.1} parent=0 // pred_check
    _
  $region11: #{transition_vae_forward.1} parent=0 // pred_check_branch
    %17 = sbr.rel (0) target = $region13
  $region12: #{transition_vae_forward.1} parent=0 // pred_region
    _
  $region13: #{transition_vae_forward.1} parent=0 // pred_fallthru
    _
  // Predicated region
  $region14: #{transition_vae_forward.1} parent=0 // pred_check
    _
  $region15: #{transition_vae_forward.1} parent=0 // pred_check_branch
    %19 = sbr.rel (0) target = $region17
  $region16: #{transition_vae_forward.1} parent=0 // pred_region
    _
  $region17: #{transition_vae_forward.1} parent=0 // pred_fallthru
    _
  // Predicated region
  $region18: #{transition_vae_forward.1} parent=0 // pred_check
    _
  $region19: #{transition_vae_forward.1} parent=0 // pred_check_branch
    %21 = sbr.rel (0) target = $region21
  $region20: #{transition_vae_forward.1} parent=0 // pred_region
    _
  $region21: #{transition_vae_forward.1} parent=0 // pred_fallthru
    _
  // Predicated region
  $region22: #{transition_vae_forward.1} parent=0 // pred_check
    _
  $region23: #{transition_vae_forward.1} parent=0 // pred_check_branch
    %23 = sbr.rel (0) target = $region25
  $region24: #{transition_vae_forward.1} parent=0 // pred_region
    _
  $region25: #{transition_vae_forward.1} parent=0 // pred_fallthru
    _
  // Predicated region
  $region26: #{transition_vae_forward.1} parent=0 // pred_check
    _
  $region27: #{transition_vae_forward.1} parent=0 // pred_check_branch
    %25 = sbr.rel (0) target = $region29
  $region28: #{transition_vae_forward.1} parent=0 // pred_region
    _
  $region29: #{transition_vae_forward.1} parent=0 // pred_fallthru
    _
  %v27 = vld [vmem:[%s0] sm:$0xff]
  %v28 = vpack.c.bf16 %v27, %v27
  %v29 = vld [vmem:[%s2] sm:$0xf]
  %v30 = vld [vmem:[%s2 + $0x4] sm:$0xf]
  %v31 = vld [vmem:[%s2 + $0x8] sm:$0xf]
  %v32 = vld [vmem:[%s2 + $0xc] sm:$0xf]
  %v33 = vld [vmem:[%s2 + $0x10] sm:$0xf]
  %v34 = vld [vmem:[%s3] sm:$0x1]
  %v36 = vperm.slane %v34, 0
  %v43 = vunpack.c.l.b16 %v29
  %v44 = vunpack.c.l.b16 %v30
  %v45 = vunpack.c.l.b16 %v31
  %v46 = vunpack.c.l.b16 %v32
  %v47 = vunpack.c.l.b16 %v33
  %v48 = vpack.c.b16 %v44, %v43
  %v49 = vpack.c.b16 %v46, %v45
  %v50 = vpack.c.b16 %v47, %v47
  %vm53 = vcmask 326656
  %v55 = vsel %vm53, %v28, 0
  %vm57 = vcmask 1043456
  %v59 = vsel %vm57, %v50, 0
  %61 = vmatpush.bf16.msra.mxu0 0
  %62 = vmatpush.bf16.msra.mxu0 0
  %63 = vmatpush.bf16.msra.mxu0 0
  %64 = vmatpush.bf16.msra.mxu0 0
  %65 = vmatpush.bf16.msra.mxu0 0
  %66 = vmatpush.bf16.msra.mxu0 %v59
  %67 = vmatpush.bf16.msra.mxu0 %v49
  %68 = vmatpush.bf16.msra.mxu0 %v48
  %69 = vmatmul.bf16.gmra.mxu0 %v55
  %v70 = vpop.f32.mrf.mxu0
  %v71 = vadd.f32 %v36, %v70
  %v72 = vpop.f32.mrf.mxu0
  %73 = vdwg.mxu0
  %v74 = vld [vmem:[%s1] sm:$0xff]
  %v75 = vmul.f32 %v71, 0.5
  %v76 = vmul.f32 %v75, 1.442695
  %v77 = vpow.pop %v76
  %79 = vrot.lane.b32.xlu0 %v77, 112
  %v80 = vpop.permute.xlu0 %79
  %v82 = vmul.f32 %v74, %v80
  %v83 = vadd.f32 %v71, %v82
  %v84 = vpack.c.bf16 %v83, %v83
  %v85 = vld [vmem:[%s4] sm:$0xf]
  %v86 = vld [vmem:[%s4 + $0x4] sm:$0xf]
  %v89 = vunpack.c.l.b16 %v85
  %v90 = vunpack.c.l.b16 %v86
  %v91 = vpack.c.b16 %v90, %v89
  %vm93 = vcmask 130048
  %v95 = vsel %vm93, %v84, 0
  %97 = vmatpush.bf16.msra.mxu0 0
  %98 = vmatpush.bf16.msra.mxu0 0
  %99 = vmatpush.bf16.msra.mxu0 0
  %100 = vmatpush.bf16.msra.mxu0 0
  %101 = vmatpush.bf16.msra.mxu0 0
  %102 = vmatpush.bf16.msra.mxu0 0
  %103 = vmatpush.bf16.msra.mxu0 0
  %104 = vmatpush.bf16.msra.mxu0 %v91
  %105 = vmatmul.bf16.gmra.mxu0 %v95
  %v106 = vpop.f32.mrf.mxu0
  %v107 = vadd.f32 0.0, %v106
  %v108 = vpop.f32.mrf.mxu0
  %109 = vdwg.mxu0
  %111 = vrot.lane.b32.xlu0 %v107, 32
  %v112 = vpop.permute.xlu0 %111
  %v114 = vadd.f32 %v71, %v112
  %v115 = vmax.f32 %v114, 0.0
  %v116 = vpack.c.bf16 %v115, %v115
  %v117 = vld [vmem:[%s5] sm:$0xf]
  %v118 = vld [vmem:[%s5 + $0x4] sm:$0xf]
  %v119 = vld [vmem:[%s5 + $0x8] sm:$0xf]
  %v120 = vld [vmem:[%s5 + $0xc] sm:$0xf]
  %v121 = vld [vmem:[%s6] sm:$0x1]
  %v123 = vperm.slane %v121, 0
  %126 = vrot.lane.b32.xlu0 %v116, 96
  %v127 = vpop.permute.xlu0 %126
  %v132 = vunpack.c.l.b16 %v117
  %v133 = vunpack.c.l.b16 %v118
  %v134 = vunpack.c.l.b16 %v119
  %v135 = vunpack.c.l.b16 %v120
  %v136 = vpack.c.b16 %v133, %v132
  %v137 = vpack.c.b16 %v135, %v134
  %vm140 = vcmask 261120
  %v142 = vsel %vm140, %v127, 0
  %144 = vmatpush.bf16.msra.mxu0 0
  %145 = vmatpush.bf16.msra.mxu0 0
  %146 = vmatpush.bf16.msra.mxu0 0
  %147 = vmatpush.bf16.msra.mxu0 0
  %148 = vmatpush.bf16.msra.mxu0 0
  %149 = vmatpush.bf16.msra.mxu0 0
  %150 = vmatpush.bf16.msra.mxu0 %v137
  %151 = vmatpush.bf16.msra.mxu0 %v136
  %152 = vmatmul.bf16.gmra.mxu0 %v142
  %v153 = vpop.f32.mrf.mxu0
  %v154 = vadd.f32 %v123, %v153
  %v155 = vpop.f32.mrf.mxu0
  %156 = vdwg.mxu0
  %158 = vrot.lane.b32.xlu0 %v154, 32
  %v159 = vpop.permute.xlu0 %158
  %v161 = vsel %vm140, %v71, %v159
  %vm162 = vcmask 392192
  %163 = vst.msk [vmem:[%s7] sm:$0xff] %vm162, %v161
  // Predicated region
  $region30: #{transition_vae_forward.1} parent=0 // pred_check
    _
  $region31: #{transition_vae_forward.1} parent=0 // pred_check_branch
    %165 = sbr.rel (0) target = $region33
  $region32: #{transition_vae_forward.1} parent=0 // pred_region
    _
  $region33: #{transition_vae_forward.1} parent=0 // pred_fallthru
    _
  // Predicated region
  $region34: #{transition_vae_forward.1} parent=0 // pred_check
    _
  $region35: #{transition_vae_forward.1} parent=0 // pred_check_branch
    %167 = sbr.rel (0) target = $region37
  $region36: #{transition_vae_forward.1} parent=0 // pred_region
    _
  $region37: #{transition_vae_forward.1} parent=0 // pred_fallthru
    _

</llo_original>
